<compile_context>
chip_gen: v7x
topology: tpu7x:2x2x1
jax: 0.10.0
libtpu: 0.0.40
codegen_flags: <defaults>
</compile_context>

<pallas_src>
import jax
import jax.numpy as jnp
from jax.experimental import pallas as pl
from jax.experimental.pallas import tpu as pltpu


def _round_up(x, m):
    return ((x + m - 1) // m) * m


# ----------------------------- Pallas kernel -------------------------------
def cosrec_kernel(e_ref, w1_ref, b1_ref, w2_ref, b2_ref, s_ref):
    """One program == Bt batch examples.

    e_ref  : (Bt, L, D)   f32   item embeddings for the tile
    w1_ref : (D, 2*fcp)   f32   [W1_first_half | W1_second_half] (fc padded)
    b1_ref : (1, fcp)     f32   g_fc1 bias (padded)
    w2_ref : (fcp, fcp)   bf16  g_fc2 weight (transposed, padded)
    b2_ref : (1, fcp)     f32   g_fc2 bias (padded)
    s_ref  : (Bt, fcp)    f32   per-example sum over the L*L pairs of g_fc2 out
    """
    Bt, L, D = e_ref.shape
    fcp = s_ref.shape[-1]

    e = e_ref[...].reshape(Bt * L, D)                                  # (Bt*L, D)
    # One MXU call produces both halves of the factored first Linear (f32,
    # it is a tiny GEMM and keeps h1 exact).
    ab = jnp.dot(e, w1_ref[...], preferred_element_type=jnp.float32)  # (Bt*L, 2*fcp)

    # Fold the g_fc1 bias in here over Bt*L rows instead of over Bt*L*L pair
    # rows below (L x fewer VALU ops on the broadcast path).
    a = (ab[:, :fcp] + b1_ref[...]).reshape(Bt, 1, L, fcp)  # inner pair index (q)
    b = ab[:, fcp:].reshape(Bt, L, 1, fcp)                  # outer pair index (p)

    h1 = jnp.maximum(a + b, 0.0)                            # (Bt, L, L, fcp) f32
    h1f = h1.reshape(Bt * L * L, fcp)

    # Dominant GEMM: bf16 operands, f32 accumulation; bias/relu stay f32.
    # (On v6e/v7x the h1 elementwise path could also run in bf16; kept f32 so
    #  the same kernel is optimal on v5e's f32-only VPU.)
    h2 = jnp.maximum(
        jnp.dot(h1f.astype(jnp.bfloat16), w2_ref[...],
                preferred_element_type=jnp.float32)
        + b2_ref[...], 0.0)                                 # (Bt*L*L, fcp) f32
    # TODO(synk): Dropout(p=0.5) is identity in eval mode; training-mode dropout
    #             (stateful PRNG masking via pltpu.prng_*) is not implemented.
    s_ref[...] = h2.reshape(Bt, L * L, fcp).sum(axis=1)     # (Bt, fcp)


# ------------------------------- wrapper ------------------------------------
def cosrec_forward(params, seq_var, user_var, item_var, b_tile=64):
    """Matches CosRec_base.forward(seq_var, user_var, item_var, for_pred=False)."""
    mb, L = seq_var.shape
    D = params["item_emb"].shape[1]
    fc = params["g1_w"].shape[0]

    fcp = _round_up(fc, 128)                 # pad fc -> lane-dense multiple of 128
    pad = fcp - fc

    # ---- embedding gathers (XLA glue) ----
    item_embs = params["item_emb"][seq_var].astype(jnp.float32)        # (mb, L, D)
    user_emb = params["user_emb"][user_var[:, 0]].astype(jnp.float32)  # (mb, D)

    # ---- weight prep: split g_fc1 into the two concat halves, zero-pad fc ----
    # (zero padding of b1/b2 keeps the padded columns exactly 0 through relu)
    w1t = params["g1_w"].T.astype(jnp.float32)                         # (2D, fc)
    w1_first = jnp.pad(w1t[:D], ((0, 0), (0, pad)))                    # (D, fcp)
    w1_second = jnp.pad(w1t[D:], ((0, 0), (0, pad)))                   # (D, fcp)
    w1cat = jnp.concatenate([w1_first, w1_second], axis=1)             # (D, 2*fcp)
    b1 = jnp.pad(params["g1_b"].astype(jnp.float32), (0, pad))[None, :]
    # g_fc2 weight shipped as bf16 (MXU-native, half the DMA); bias stays f32.
    w2 = jnp.pad(params["g2_w"].T.astype(jnp.float32),
                 ((0, pad), (0, pad))).astype(jnp.bfloat16)            # (fcp, fcp)
    b2 = jnp.pad(params["g2_b"].astype(jnp.float32), (0, pad))[None, :]

    # ---- batch tile selection ----
    bt = min(b_tile, _round_up(mb, 8))       # don't over-pad tiny batches
    # Keep >= 2 grid steps when possible so v7x can shard the parallel axis
    # across its 2 TensorCores (no effect on v5e/v6e).
    if _round_up(mb, bt) // bt < 2:
        half = _round_up(pl.cdiv(mb, 2), 8)
        if 8 <= half < bt and _round_up(mb, half) // half >= 2:
            bt = half
    mbp = _round_up(mb, bt)
    if mbp != mb:
        item_embs = jnp.pad(item_embs, ((0, mbp - mb), (0, 0), (0, 0)))

    grid = (mbp // bt,)

    # Advisory cost estimate for XLA's scheduler around the custom call.
    flops = 2 * mbp * L * L * fcp * fcp + 2 * mbp * L * D * (2 * fcp)
    bytes_accessed = (item_embs.size * 4 + w1cat.size * 4 + b1.size * 4
                      + w2.size * 2 + b2.size * 4 + mbp * fcp * 4)

    s = pl.pallas_call(
        cosrec_kernel,
        out_shape=jax.ShapeDtypeStruct((mbp, fcp), jnp.float32),
        grid_spec=pltpu.PrefetchScalarGridSpec(
            num_scalar_prefetch=0,
            grid=grid,
            in_specs=[
                pl.BlockSpec((bt, L, D), lambda i: (i, 0, 0)),      # item embs
                pl.BlockSpec((D, 2 * fcp), lambda i: (0, 0)),       # [W1_i|W1_j]
                pl.BlockSpec((1, fcp), lambda i: (0, 0)),           # b1
                pl.BlockSpec((fcp, fcp), lambda i: (0, 0)),         # W2 (g_fc2, bf16)
                pl.BlockSpec((1, fcp), lambda i: (0, 0)),           # b2 (g_fc2)
            ],
            out_specs=pl.BlockSpec((bt, fcp), lambda i: (i, 0)),
        ),
        compiler_params=pltpu.CompilerParams(dimension_semantics=("parallel",)),
        cost_estimate=pl.CostEstimate(flops=int(flops), transcendentals=0,
                                      bytes_accessed=int(bytes_accessed)),
    )(item_embs, w1cat, b1, w2, b2)

    s = s[:mb, :fc]                                                    # (mb, fc)

    # ---- final per-target scoring: T is tiny (3 lanes), so do it in XLA ----
    x = jnp.concatenate([s, user_emb], axis=1)                         # (mb, fc+D)
    wt = params["W2"][item_var]                                        # (mb, T, fc+D)
    btarget = params["b2"][item_var][:, :, 0]                          # (mb, T)
    return jnp.einsum("btk,bk->bt", wt, x) + btarget                   # (mb, T)


# --------------------------- pure-JAX reference ------------------------------
def cosrec_reference(params, seq_var, user_var, item_var):
    item_embs = params["item_emb"][seq_var]
    user_emb = params["user_emb"][user_var[:, 0]]
    mb, L, D = item_embs.shape
    fc = params["g1_w"].shape[0]
    item_i = jnp.broadcast_to(item_embs[:, None, :, :], (mb, L, L, D))
    item_j = jnp.broadcast_to(item_embs[:, :, None, :], (mb, L, L, D))
    all_embed = jnp.concatenate([item_i, item_j], -1).reshape(-1, 2 * D)
    x_ = jax.nn.relu(all_embed @ params["g1_w"].T + params["g1_b"])
    x_ = jax.nn.relu(x_ @ params["g2_w"].T + params["g2_b"])
    x = x_.reshape(mb, L * L, fc).sum(1)
    x = jnp.concatenate([x, user_emb], 1)                              # (mb, fc+D)
    w2 = params["W2"][item_var]                                        # (mb,T,fc+D)
    b2 = params["b2"][item_var][:, :, 0]                               # (mb, T)
    return jnp.einsum("btk,bk->bt", w2, x) + b2


# --------------------------------- main --------------------------------------
if __name__ == "__main__":
    # Small, module-consistent sizes.
    num_users, num_items = 10, 20
    seq_len, embed_dim, fc_dim = 8, 32, 100
    mb, n_targets = 2, 3

    key = jax.random.PRNGKey(0)
    k = jax.random.split(key, 8)

    params = {
        "user_emb": (jax.random.normal(k[0], (num_users, embed_dim), jnp.float32)
                     * (1.0 / embed_dim)),
        "item_emb": (jax.random.normal(k[1], (num_items, embed_dim), jnp.float32)
                     * (1.0 / embed_dim)),
        "W2": (jax.random.normal(k[2], (num_items, fc_dim + embed_dim), jnp.float32)
               * (1.0 / (fc_dim + embed_dim))),
        "b2": jnp.zeros((num_items, 1), jnp.float32),
        "g1_w": (jax.random.normal(k[3], (fc_dim, 2 * embed_dim), jnp.float32)
                 * (1.0 / (2 * embed_dim) ** 0.5)),
        "g1_b": jax.random.normal(k[4], (fc_dim,), jnp.float32) * 0.01,
        "g2_w": (jax.random.normal(k[5], (fc_dim, fc_dim), jnp.float32)
                 * (1.0 / fc_dim ** 0.5)),
        "g2_b": jax.random.normal(k[6], (fc_dim,), jnp.float32) * 0.01,
    }

    kk = jax.random.split(k[7], 3)
    seq_var = jax.random.randint(kk[0], (mb, seq_len), 0, num_items, jnp.int32)
    user_var = jax.random.randint(kk[1], (mb, 1), 0, num_users, jnp.int32)
    item_var = jax.random.randint(kk[2], (mb, n_targets), 0, num_items, jnp.int32)

    out = jax.jit(cosrec_forward)(params, seq_var, user_var, item_var)
    jax.block_until_ready(out)

    ref = cosrec_reference(params, seq_var, user_var, item_var)
    assert out.shape == (mb, n_targets)
    assert jnp.allclose(out, ref, atol=2e-3, rtol=2e-3), (out, ref)

    print("KERNEL_OK")
</pallas_src>

<mosaic_0001>
module attributes {stable_mosaic.version = 11 : i64} {
  func.func @cosrec_kernel(%arg0: i32, %arg1: memref<8x8x32xf32, #tpu.memory_space<vmem>>, %arg2: memref<32x256xf32, #tpu.memory_space<vmem>>, %arg3: memref<1x128xf32, #tpu.memory_space<vmem>>, %arg4: memref<128x128xbf16, #tpu.memory_space<vmem>>, %arg5: memref<1x128xf32, #tpu.memory_space<vmem>>, %arg6: memref<8x128xf32, #tpu.memory_space<vmem>>) attributes {dimension_semantics = [#tpu.dimension_semantics<parallel>], iteration_bounds = array<i64: 1>, scalar_prefetch = 0 : i64, scratch_operands = 0 : i64, tpu.core_type = #tpu.core_type<tc>, window_params = [{transform_indices = @transform_0, window_bounds = array<i64: 8, 8, 32>}, {pipeline_mode = #tpu.pipeline_mode<synchronous>, transform_indices = @transform_1, window_bounds = array<i64: 32, 256>}, {pipeline_mode = #tpu.pipeline_mode<synchronous>, transform_indices = @transform_2, window_bounds = array<i64: 1, 128>}, {pipeline_mode = #tpu.pipeline_mode<synchronous>, transform_indices = @transform_3, window_bounds = array<i64: 128, 128>}, {pipeline_mode = #tpu.pipeline_mode<synchronous>, transform_indices = @transform_4, window_bounds = array<i64: 1, 128>}, {transform_indices = @transform_5, window_bounds = array<i64: 8, 128>}]} {
    %c0 = arith.constant 0 : index
    %c0_0 = arith.constant 0 : index
    %c0_1 = arith.constant 0 : index
    %0 = vector.load %arg1[%c0, %c0_0, %c0_1] : memref<8x8x32xf32, #tpu.memory_space<vmem>>, vector<8x8x32xf32>
    %1 = vector.shape_cast %0 : vector<8x8x32xf32> to vector<64x32xf32>
    %c0_2 = arith.constant 0 : index
    %c0_3 = arith.constant 0 : index
    %2 = vector.load %arg2[%c0_2, %c0_3] : memref<32x256xf32, #tpu.memory_space<vmem>>, vector<32x256xf32>
    %cst = arith.constant dense<0.000000e+00> : vector<64x256xf32>
    %3 = tpu.matmul %1, %2, %cst {dimension_numbers = #tpu.dot_dimension_numbers<[1], [0], [0], [1], [0, 0, 1, 1], [], []>} : vector<64x32xf32>, vector<32x256xf32>, vector<64x256xf32> -> vector<64x256xf32>
    %4 = vector.extract_strided_slice %3 {offsets = [0, 0], sizes = [64, 128], strides = [1, 1]} : vector<64x256xf32> to vector<64x128xf32>
    %c0_4 = arith.constant 0 : index
    %c0_5 = arith.constant 0 : index
    %5 = vector.load %arg3[%c0_4, %c0_5] : memref<1x128xf32, #tpu.memory_space<vmem>>, vector<1x128xf32>
    %6 = vector.broadcast %5 : vector<1x128xf32> to vector<64x128xf32>
    %7 = arith.addf %4, %6 : vector<64x128xf32>
    %8 = vector.shape_cast %7 : vector<64x128xf32> to vector<8x1x8x128xf32>
    %9 = vector.extract_strided_slice %3 {offsets = [0, 128], sizes = [64, 128], strides = [1, 1]} : vector<64x256xf32> to vector<64x128xf32>
    %10 = vector.shape_cast %9 : vector<64x128xf32> to vector<8x8x1x128xf32>
    %11 = vector.broadcast %8 : vector<8x1x8x128xf32> to vector<8x8x8x128xf32>
    %12 = vector.broadcast %10 : vector<8x8x1x128xf32> to vector<8x8x8x128xf32>
    %13 = arith.addf %11, %12 : vector<8x8x8x128xf32>
    %cst_6 = arith.constant 0.000000e+00 : f32
    %14 = vector.broadcast %cst_6 : f32 to vector<8x8x8x128xf32>
    %15 = arith.maximumf %13, %14 : vector<8x8x8x128xf32>
    %16 = vector.shape_cast %15 : vector<8x8x8x128xf32> to vector<512x128xf32>
    %17 = arith.truncf %16 : vector<512x128xf32> to vector<512x128xbf16>
    %c0_7 = arith.constant 0 : index
    %c0_8 = arith.constant 0 : index
    %18 = vector.load %arg4[%c0_7, %c0_8] : memref<128x128xbf16, #tpu.memory_space<vmem>>, vector<128x128xbf16>
    %cst_9 = arith.constant dense<0.000000e+00> : vector<512x128xf32>
    %19 = tpu.matmul %17, %18, %cst_9 {dimension_numbers = #tpu.dot_dimension_numbers<[1], [0], [0], [1], [0, 0, 1, 1], [], []>} : vector<512x128xbf16>, vector<128x128xbf16>, vector<512x128xf32> -> vector<512x128xf32>
    %c0_10 = arith.constant 0 : index
    %c0_11 = arith.constant 0 : index
    %20 = vector.load %arg5[%c0_10, %c0_11] : memref<1x128xf32, #tpu.memory_space<vmem>>, vector<1x128xf32>
    %21 = vector.broadcast %20 : vector<1x128xf32> to vector<512x128xf32>
    %22 = arith.addf %19, %21 : vector<512x128xf32>
    %cst_12 = arith.constant 0.000000e+00 : f32
    %23 = vector.broadcast %cst_12 : f32 to vector<512x128xf32>
    %24 = arith.maximumf %22, %23 : vector<512x128xf32>
    %25 = vector.shape_cast %24 : vector<512x128xf32> to vector<8x64x128xf32>
    %cst_13 = arith.constant dense<0.000000e+00> : vector<8x128xf32>
    %26 = vector.multi_reduction <add>, %25, %cst_13 [1] : vector<8x64x128xf32> to vector<8x128xf32>
    %c0_14 = arith.constant 0 : index
    %c0_15 = arith.constant 0 : index
    %27 = vector.load %arg6[%c0_14, %c0_15] : memref<8x128xf32, #tpu.memory_space<vmem>>, vector<8x128xf32>
    tpu.vector_store %arg6[%c0_14, %c0_15], %26 {strides = array<i32>} : memref<8x128xf32, #tpu.memory_space<vmem>>, vector<8x128xf32>,
    return
  }
  func.func @transform_0(%arg0: i32) -> (i32, i32, i32) {
    %c0_i32 = arith.constant 0 : i32
    %c0_i32_0 = arith.constant 0 : i32
    %c0_i32_1 = arith.constant 0 : i32
    return %arg0, %c0_i32, %c0_i32_0 : i32, i32, i32
  }
  func.func @transform_1(%arg0: i32) -> (i32, i32) {
    %c0_i32 = arith.constant 0 : i32
    %c0_i32_0 = arith.constant 0 : i32
    %c0_i32_1 = arith.constant 0 : i32
    return %c0_i32, %c0_i32_0 : i32, i32
  }
  func.func @transform_2(%arg0: i32) -> (i32, i32) {
    %c0_i32 = arith.constant 0 : i32
    %c0_i32_0 = arith.constant 0 : i32
    %c0_i32_1 = arith.constant 0 : i32
    return %c0_i32, %c0_i32_0 : i32, i32
  }
  func.func @transform_3(%arg0: i32) -> (i32, i32) {
    %c0_i32 = arith.constant 0 : i32
    %c0_i32_0 = arith.constant 0 : i32
    %c0_i32_1 = arith.constant 0 : i32
    return %c0_i32, %c0_i32_0 : i32, i32
  }
  func.func @transform_4(%arg0: i32) -> (i32, i32) {
    %c0_i32 = arith.constant 0 : i32
    %c0_i32_0 = arith.constant 0 : i32
    %c0_i32_1 = arith.constant 0 : i32
    return %c0_i32, %c0_i32_0 : i32, i32
  }
  func.func @transform_5(%arg0: i32) -> (i32, i32) {
    %c0_i32 = arith.constant 0 : i32
    %c0_i32_0 = arith.constant 0 : i32
    return %arg0, %c0_i32 : i32, i32
  }
}

</mosaic_0001>

<llo_original>
// kernel: squeeze.3
$region0: #{squeeze.3}
  %s0 = inlined_call_operand.vmem [shape: f32[6], index: 0, kind: input, shape index: {}]
  %s1 = inlined_call_operand.vmem [shape: f32[2,3], index: 1, kind: output, shape index: {}]
  $region1: #{squeeze.3} parent=0
    #allocation0 [shape = 'u8[4096]{0}', space=vmem, size = 0x1000, scoped, tag = 'scoped mem for output reshape']
    #allocation1 [shape = 'u8[4096]{0}', space=vmem, size = 0x1000, scoped, tag = 'scoped mem for input reshape']
    %s3 = sshllo.u32 0, 1
    %v4 = vld [vmem:[%s0] sm:%s3]
    %5 = vst [vmem:[#allocation1] sm:%s3] %v4
    %v6 = vld [vmem:[#allocation1] sm:$0x1]
    %vm7 = vcmask 23552
    %8 = vst.msk [vmem:[#allocation0] sm:$0x1] %vm7, %v6
    %v9 = vld [vmem:[#allocation1] sm:$0x1]
    %10 = vrot.lane.b32.xlu0 %v9, 125
    %v11 = vpop.permute.xlu0 %10
    %vm12 = vcmask 23552
    %s13 = scalar_lea.vmem [#allocation0], 1
    %14 = vst.msk [vmem:[%s13] sm:$0x1] %vm12, %v11
    %s16 = sshllo.u32 0, 2
    %v18 = vld [vmem:[#allocation0] sm:%s16]
    %s19 = sshllo.u32 0, 2
    %20 = vst [vmem:[%s1] sm:%s19] %v18

// kernel: cosrec_forward.1
$region0: #{cosrec_forward.1}
  #allocation0 [shape = 'u32[]', space=smem, size = 0x4, offset = 0x4, fixed_abs, tag = 'smem constant byte address 0x4 - core index']
  #allocation1 [shape = 'u32[144,128]{1,0:T(1,128)}', space=vmem, size = 0x12000, scoped, tag = 'internal scratch']
  %s0 = inlined_call_operand.vmem [shape: f32[8,8,32], index: 0, kind: input, shape index: {}]
  %s1 = inlined_call_operand.vmem [shape: f32[32,256], index: 1, kind: input, shape index: {}]
  %s2 = inlined_call_operand.vmem [shape: f32[1,128], index: 2, kind: input, shape index: {}]
  %s3 = inlined_call_operand.vmem [shape: bf16[128,128], index: 3, kind: input, shape index: {}]
  %s4 = inlined_call_operand.vmem [shape: f32[1,128], index: 4, kind: input, shape index: {}]
  %s5 = inlined_call_operand.vmem [shape: f32[8,128], index: 5, kind: output, shape index: {}]
  %s6 = sld [smem:[#allocation0]]
  $region30: #{cosrec_forward.1} parent=0
    _
  %s8 = ssub.s32 1, %s6
  %s9 = scalar_select 0, %s8, %s6
  // Predicated region
  $region2: #{cosrec_forward.1} parent=0 // pred_check
    _
  $region3: #{cosrec_forward.1} parent=0 // pred_check_branch
    %11 = sbr.rel (0) target = $region5
  $region4: #{cosrec_forward.1} parent=0 // pred_region
    _
  $region5: #{cosrec_forward.1} parent=0 // pred_fallthru
    _
  // Predicated region
  $region6: #{cosrec_forward.1} parent=0 // pred_check
    _
  $region7: #{cosrec_forward.1} parent=0 // pred_check_branch
    %13 = sbr.rel (0) target = $region9
  $region8: #{cosrec_forward.1} parent=0 // pred_region
    _
  $region9: #{cosrec_forward.1} parent=0 // pred_fallthru
    _
  // Predicated region
  $region10: #{cosrec_forward.1} parent=0 // pred_check
    _
  $region11: #{cosrec_forward.1} parent=0 // pred_check_branch
    %15 = sbr.rel (0) target = $region13
  $region12: #{cosrec_forward.1} parent=0 // pred_region
    _
  $region13: #{cosrec_forward.1} parent=0 // pred_fallthru
    _
  // Predicated region
  $region14: #{cosrec_forward.1} parent=0 // pred_check
    _
  $region15: #{cosrec_forward.1} parent=0 // pred_check_branch
    %17 = sbr.rel (0) target = $region17
  $region16: #{cosrec_forward.1} parent=0 // pred_region
    _
  $region17: #{cosrec_forward.1} parent=0 // pred_fallthru
    _
  // Predicated region
  $region18: #{cosrec_forward.1} parent=0 // pred_check
    _
  $region19: #{cosrec_forward.1} parent=0 // pred_check_branch
    %19 = sbr.rel (0) target = $region21
  $region20: #{cosrec_forward.1} parent=0 // pred_region
    _
  $region21: #{cosrec_forward.1} parent=0 // pred_fallthru
    _
  %v21 = vld [vmem:[%s0] sm:$0xff]
  %v22 = vld [vmem:[%s0 + $0x8] sm:$0xff]
  %v23 = vld [vmem:[%s0 + $0x10] sm:$0xff]
  %v24 = vld [vmem:[%s0 + $0x18] sm:$0xff]
  %v25 = vld [vmem:[%s0 + $0x20] sm:$0xff]
  %v26 = vld [vmem:[%s0 + $0x28] sm:$0xff]
  %v27 = vld [vmem:[%s0 + $0x30] sm:$0xff]
  %v28 = vld [vmem:[%s0 + $0x38] sm:$0xff]
  %v29 = vld [vmem:[%s1] sm:$0xff]
  %v30 = vld [vmem:[%s1 + $0x8] sm:$0xff]
  %v31 = vld [vmem:[%s1 + $0x10] sm:$0xff]
  %v32 = vld [vmem:[%s1 + $0x18] sm:$0xff]
  %v33 = vld [vmem:[%s1 + $0x20] sm:$0xff]
  %v34 = vld [vmem:[%s1 + $0x28] sm:$0xff]
  %v35 = vld [vmem:[%s1 + $0x30] sm:$0xff]
  %v36 = vld [vmem:[%s1 + $0x38] sm:$0xff]
  %vm37 = vcmask 261120
  %v39 = vsel %vm37, %v21, 0
  %v42 = vsel %vm37, %v22, 0
  %v45 = vsel %vm37, %v23, 0
  %v48 = vsel %vm37, %v24, 0
  %v51 = vsel %vm37, %v25, 0
  %v54 = vsel %vm37, %v26, 0
  %v57 = vsel %vm37, %v27, 0
  %v60 = vsel %vm37, %v28, 0
  %62 = vmatprep.subr.mxu0 %v30
  %63 = vmatpush1.msra.mxu0 %v29
  %64 = vmatprep.subr.mxu0 %v32
  %65 = vmatpush1.msra.mxu0 %v31
  %66 = vmatprep.subr.mxu0 %v34
  %67 = vmatpush1.msra.mxu0 %v33
  %68 = vmatprep.subr.mxu0 %v36
  %69 = vmatpush1.msra.mxu0 %v35
  %70 = vmatprep.subr.mxu0 0.0
  %71 = vmatpush1.msra.mxu0 0.0
  %72 = vmatprep.subr.mxu0 0.0
  %73 = vmatpush1.msra.mxu0 0.0
  %74 = vmatprep.subr.mxu0 0.0
  %75 = vmatpush1.msra.mxu0 0.0
  %76 = vmatprep.subr.mxu0 0.0
  %77 = vmatpush1.msra.mxu0 0.0
  %78 = vmatprep.subr.mxu0 0.0
  %79 = vmatpush1.msra.mxu0 0.0
  %80 = vmatprep.subr.mxu0 0.0
  %81 = vmatpush1.msra.mxu0 0.0
  %82 = vmatprep.subr.mxu0 0.0
  %83 = vmatpush1.msra.mxu0 0.0
  %84 = vmatprep.subr.mxu0 0.0
  %85 = vmatpush1.msra.mxu0 0.0
  %86 = vmatprep.subr.mxu0 0.0
  %87 = vmatpush1.msra.mxu0 0.0
  %88 = vmatprep.subr.mxu0 0.0
  %89 = vmatpush1.msra.mxu0 0.0
  %90 = vmatprep.subr.mxu0 0.0
  %91 = vmatpush1.msra.mxu0 0.0
  %92 = vmatprep.subr.mxu0 0.0
  %93 = vmatpush1.msra.mxu0 0.0
  %94 = vmatprep.subr.mxu0 0.0
  %95 = vmatpush1.msra.mxu0 0.0
  %96 = vmatprep.subr.mxu0 0.0
  %97 = vmatpush1.msra.mxu0 0.0
  %98 = vmatprep.subr.mxu0 0.0
  %99 = vmatpush1.msra.mxu0 0.0
  %100 = vmatprep.subr.mxu0 0.0
  %101 = vmatpush1.msra.mxu0 0.0
  %102 = vmatprep.subr.mxu0 0.0
  %103 = vmatpush1.msra.mxu0 0.0
  %104 = vmatprep.subr.mxu0 0.0
  %105 = vmatpush1.msra.mxu0 0.0
  %106 = vmatprep.subr.mxu0 0.0
  %107 = vmatpush1.msra.mxu0 0.0
  %108 = vmatprep.subr.mxu0 0.0
  %109 = vmatpush1.msra.mxu0 0.0
  %110 = vmatprep.subr.mxu0 0.0
  %111 = vmatpush1.msra.mxu0 0.0
  %112 = vmatprep.subr.mxu0 0.0
  %113 = vmatpush1.msra.mxu0 0.0
  %114 = vmatprep.subr.mxu0 0.0
  %115 = vmatpush1.msra.mxu0 0.0
  %116 = vmatprep.subr.mxu0 0.0
  %117 = vmatpush1.msra.mxu0 0.0
  %118 = vmatprep.subr.mxu0 0.0
  %119 = vmatpush1.msra.mxu0 0.0
  %120 = vmatprep.subr.mxu0 0.0
  %121 = vmatpush1.msra.mxu0 0.0
  %122 = vmatprep.subr.mxu0 0.0
  %123 = vmatpush1.msra.mxu0 0.0
  %124 = vmatprep.subr.mxu0 0.0
  %125 = vmatpush1.msra.mxu0 0.0
  %126 = vmatprep.mubr.f32.mxu0 0.0
  %127 = vmatmul.mubr.f32.gmra.mrb[0].mxu0 %v39
  %v128 = vpop.f32.mrb[0].mxu0
  %v129 = vadd.f32 0.0, %v128
  %v130 = vpop.f32.mrb[0].mxu0
  %v131 = vadd.f32 0.0, %v130
  %132 = vmatprep.mubr.f32.mxu0 0.0
  %133 = vmatmul.mubr.f32.gmra.mrb[0].mxu0 %v42
  %v134 = vpop.f32.mrb[0].mxu0
  %v135 = vadd.f32 0.0, %v134
  %v136 = vpop.f32.mrb[0].mxu0
  %v137 = vadd.f32 0.0, %v136
  %138 = vmatprep.mubr.f32.mxu0 0.0
  %139 = vmatmul.mubr.f32.gmra.mrb[0].mxu0 %v45
  %v140 = vpop.f32.mrb[0].mxu0
  %v141 = vadd.f32 0.0, %v140
  %v142 = vpop.f32.mrb[0].mxu0
  %v143 = vadd.f32 0.0, %v142
  %144 = vmatprep.mubr.f32.mxu0 0.0
  %145 = vmatmul.mubr.f32.gmra.mrb[0].mxu0 %v48
  %v146 = vpop.f32.mrb[0].mxu0
  %v147 = vadd.f32 0.0, %v146
  %v148 = vpop.f32.mrb[0].mxu0
  %v149 = vadd.f32 0.0, %v148
  %150 = vmatprep.mubr.f32.mxu0 0.0
  %151 = vmatmul.mubr.f32.gmra.mrb[0].mxu0 %v51
  %v152 = vpop.f32.mrb[0].mxu0
  %v153 = vadd.f32 0.0, %v152
  %v154 = vpop.f32.mrb[0].mxu0
  %v155 = vadd.f32 0.0, %v154
  %156 = vmatprep.mubr.f32.mxu0 0.0
  %157 = vmatmul.mubr.f32.gmra.mrb[0].mxu0 %v54
  %v158 = vpop.f32.mrb[0].mxu0
  %v159 = vadd.f32 0.0, %v158
  %v160 = vpop.f32.mrb[0].mxu0
  %v161 = vadd.f32 0.0, %v160
  %162 = vmatprep.mubr.f32.mxu0 0.0
  %163 = vmatmul.mubr.f32.gmra.mrb[0].mxu0 %v57
  %v164 = vpop.f32.mrb[0].mxu0
  %v165 = vadd.f32 0.0, %v164
  %v166 = vpop.f32.mrb[0].mxu0
  %v167 = vadd.f32 0.0, %v166
  %168 = vmatprep.mubr.f32.mxu0 0.0
  %169 = vmatmul.mubr.f32.gmra.mrb[0].mxu0 %v60
  %v170 = vpop.f32.mrb[0].mxu0
  %v171 = vadd.f32 0.0, %v170
  %v172 = vpop.f32.mrb[0].mxu0
  %v173 = vadd.f32 0.0, %v172
  %174 = vdwg.mxu0
  %v175 = vld [vmem:[%s2] sm:$0x1]
  %v177 = vlaneseq
  %v178 = vshrl.u32 %v177, 7
  %v179 = vsub.s32 0, %v178
  %v180 = vrot.slane %v175, %v179
  %v182 = vadd.f32 %v129, %v180
  %v183 = vadd.f32 %v135, %v180
  %v184 = vadd.f32 %v141, %v180
  %v185 = vadd.f32 %v147, %v180
  %v186 = vadd.f32 %v153, %v180
  %v187 = vadd.f32 %v159, %v180
  %v188 = vadd.f32 %v165, %v180
  %v189 = vadd.f32 %v171, %v180
  %v198 = vcombine.high %v131, %v131
  %v200 = vunpack.c.l.s4 1966171168
  %v201 = vunpack.c.0.s8 %v200
  %v202 = vlaneseq
  %v203 = vshrl.u32 %v202, 7
  %v204 = vsub.s32 %v201, %v203
  %v205 = vrot.slane %v131, %v204
  %v207 = vunpack.c.l.s4 1966171168
  %v208 = vunpack.c.0.s8 %v207
  %v209 = vlaneseq
  %v210 = vshrl.u32 %v209, 7
  %v211 = vsub.s32 %v208, %v210
  %v212 = vrot.slane %v198, %v211
  %v213 = vcombine.high %v205, %v205
  %v214 = vcombine.high %v212, %v212
  %v216 = vunpack.c.l.s4 1966171168
  %v217 = vunpack.c.0.s8 %v216
  %v218 = vlaneseq
  %v219 = vshrl.u32 %v218, 7
  %v220 = vsub.s32 %v217, %v219
  %v221 = vrot.slane %v205, %v220
  %v223 = vunpack.c.l.s4 1966171168
  %v224 = vunpack.c.0.s8 %v223
  %v225 = vlaneseq
  %v226 = vshrl.u32 %v225, 7
  %v227 = vsub.s32 %v224, %v226
  %v228 = vrot.slane %v212, %v227
  %v230 = vunpack.c.l.s4 1966171168
  %v231 = vunpack.c.0.s8 %v230
  %v232 = vlaneseq
  %v233 = vshrl.u32 %v232, 7
  %v234 = vsub.s32 %v231, %v233
  %v235 = vrot.slane %v213, %v234
  %v237 = vunpack.c.l.s4 1966171168
  %v238 = vunpack.c.0.s8 %v237
  %v239 = vlaneseq
  %v240 = vshrl.u32 %v239, 7
  %v241 = vsub.s32 %v238, %v240
  %v242 = vrot.slane %v214, %v241
  %v243 = vcombine.high %v221, %v221
  %v244 = vcombine.high %v228, %v228
  %v245 = vcombine.high %v235, %v235
  %v246 = vcombine.high %v242, %v242
  %v247 = vcombine.high %v137, %v137
  %v249 = vunpack.c.l.s4 1966171168
  %v250 = vunpack.c.0.s8 %v249
  %v251 = vlaneseq
  %v252 = vshrl.u32 %v251, 7
  %v253 = vsub.s32 %v250, %v252
  %v254 = vrot.slane %v137, %v253
  %v256 = vunpack.c.l.s4 1966171168
  %v257 = vunpack.c.0.s8 %v256
  %v258 = vlaneseq
  %v259 = vshrl.u32 %v258, 7
  %v260 = vsub.s32 %v257, %v259
  %v261 = vrot.slane %v247, %v260
  %v262 = vcombine.high %v254, %v254
  %v263 = vcombine.high %v261, %v261
  %v265 = vunpack.c.l.s4 1966171168
  %v266 = vunpack.c.0.s8 %v265
  %v267 = vlaneseq
  %v268 = vshrl.u32 %v267, 7
  %v269 = vsub.s32 %v266, %v268
  %v270 = vrot.slane %v254, %v269
  %v272 = vunpack.c.l.s4 1966171168
  %v273 = vunpack.c.0.s8 %v272
  %v274 = vlaneseq
  %v275 = vshrl.u32 %v274, 7
  %v276 = vsub.s32 %v273, %v275
  %v277 = vrot.slane %v261, %v276
  %v279 = vunpack.c.l.s4 1966171168
  %v280 = vunpack.c.0.s8 %v279
  %v281 = vlaneseq
  %v282 = vshrl.u32 %v281, 7
  %v283 = vsub.s32 %v280, %v282
  %v284 = vrot.slane %v262, %v283
  %v286 = vunpack.c.l.s4 1966171168
  %v287 = vunpack.c.0.s8 %v286
  %v288 = vlaneseq
  %v289 = vshrl.u32 %v288, 7
  %v290 = vsub.s32 %v287, %v289
  %v291 = vrot.slane %v263, %v290
  %v292 = vcombine.high %v270, %v270
  %v293 = vcombine.high %v277, %v277
  %v294 = vcombine.high %v284, %v284
  %v295 = vcombine.high %v291, %v291
  %v296 = vcombine.high %v143, %v143
  %v298 = vunpack.c.l.s4 1966171168
  %v299 = vunpack.c.0.s8 %v298
  %v300 = vlaneseq
  %v301 = vshrl.u32 %v300, 7
  %v302 = vsub.s32 %v299, %v301
  %v303 = vrot.slane %v143, %v302
  %v305 = vunpack.c.l.s4 1966171168
  %v306 = vunpack.c.0.s8 %v305
  %v307 = vlaneseq
  %v308 = vshrl.u32 %v307, 7
  %v309 = vsub.s32 %v306, %v308
  %v310 = vrot.slane %v296, %v309
  %v311 = vcombine.high %v303, %v303
  %v312 = vcombine.high %v310, %v310
  %v314 = vunpack.c.l.s4 1966171168
  %v315 = vunpack.c.0.s8 %v314
  %v316 = vlaneseq
  %v317 = vshrl.u32 %v316, 7
  %v318 = vsub.s32 %v315, %v317
  %v319 = vrot.slane %v303, %v318
  %v321 = vunpack.c.l.s4 1966171168
  %v322 = vunpack.c.0.s8 %v321
  %v323 = vlaneseq
  %v324 = vshrl.u32 %v323, 7
  %v325 = vsub.s32 %v322, %v324
  %v326 = vrot.slane %v310, %v325
  %v328 = vunpack.c.l.s4 1966171168
  %v329 = vunpack.c.0.s8 %v328
  %v330 = vlaneseq
  %v331 = vshrl.u32 %v330, 7
  %v332 = vsub.s32 %v329, %v331
  %v333 = vrot.slane %v311, %v332
  %v335 = vunpack.c.l.s4 1966171168
  %v336 = vunpack.c.0.s8 %v335
  %v337 = vlaneseq
  %v338 = vshrl.u32 %v337, 7
  %v339 = vsub.s32 %v336, %v338
  %v340 = vrot.slane %v312, %v339
  %v341 = vcombine.high %v319, %v319
  %v342 = vcombine.high %v326, %v326
  %v343 = vcombine.high %v333, %v333
  %v344 = vcombine.high %v340, %v340
  %v345 = vcombine.high %v149, %v149
  %v347 = vunpack.c.l.s4 1966171168
  %v348 = vunpack.c.0.s8 %v347
  %v349 = vlaneseq
  %v350 = vshrl.u32 %v349, 7
  %v351 = vsub.s32 %v348, %v350
  %v352 = vrot.slane %v149, %v351
  %v354 = vunpack.c.l.s4 1966171168
  %v355 = vunpack.c.0.s8 %v354
  %v356 = vlaneseq
  %v357 = vshrl.u32 %v356, 7
  %v358 = vsub.s32 %v355, %v357
  %v359 = vrot.slane %v345, %v358
  %v360 = vcombine.high %v352, %v352
  %v361 = vcombine.high %v359, %v359
  %v363 = vunpack.c.l.s4 1966171168
  %v364 = vunpack.c.0.s8 %v363
  %v365 = vlaneseq
  %v366 = vshrl.u32 %v365, 7
  %v367 = vsub.s32 %v364, %v366
  %v368 = vrot.slane %v352, %v367
  %v370 = vunpack.c.l.s4 1966171168
  %v371 = vunpack.c.0.s8 %v370
  %v372 = vlaneseq
  %v373 = vshrl.u32 %v372, 7
  %v374 = vsub.s32 %v371, %v373
  %v375 = vrot.slane %v359, %v374
  %v377 = vunpack.c.l.s4 1966171168
  %v378 = vunpack.c.0.s8 %v377
  %v379 = vlaneseq
  %v380 = vshrl.u32 %v379, 7
  %v381 = vsub.s32 %v378, %v380
  %v382 = vrot.slane %v360, %v381
  %v384 = vunpack.c.l.s4 1966171168
  %v385 = vunpack.c.0.s8 %v384
  %v386 = vlaneseq
  %v387 = vshrl.u32 %v386, 7
  %v388 = vsub.s32 %v385, %v387
  %v389 = vrot.slane %v361, %v388
  %v390 = vcombine.high %v368, %v368
  %v391 = vcombine.high %v375, %v375
  %v392 = vcombine.high %v382, %v382
  %v393 = vcombine.high %v389, %v389
  %v394 = vcombine.high %v155, %v155
  %v396 = vunpack.c.l.s4 1966171168
  %v397 = vunpack.c.0.s8 %v396
  %v398 = vlaneseq
  %v399 = vshrl.u32 %v398, 7
  %v400 = vsub.s32 %v397, %v399
  %v401 = vrot.slane %v155, %v400
  %v403 = vunpack.c.l.s4 1966171168
  %v404 = vunpack.c.0.s8 %v403
  %v405 = vlaneseq
  %v406 = vshrl.u32 %v405, 7
  %v407 = vsub.s32 %v404, %v406
  %v408 = vrot.slane %v394, %v407
  %v409 = vcombine.high %v401, %v401
  %v410 = vcombine.high %v408, %v408
  %v412 = vunpack.c.l.s4 1966171168
  %v413 = vunpack.c.0.s8 %v412
  %v414 = vlaneseq
  %v415 = vshrl.u32 %v414, 7
  %v416 = vsub.s32 %v413, %v415
  %v417 = vrot.slane %v401, %v416
  %v419 = vunpack.c.l.s4 1966171168
  %v420 = vunpack.c.0.s8 %v419
  %v421 = vlaneseq
  %v422 = vshrl.u32 %v421, 7
  %v423 = vsub.s32 %v420, %v422
  %v424 = vrot.slane %v408, %v423
  %v426 = vunpack.c.l.s4 1966171168
  %v427 = vunpack.c.0.s8 %v426
  %v428 = vlaneseq
  %v429 = vshrl.u32 %v428, 7
  %v430 = vsub.s32 %v427, %v429
  %v431 = vrot.slane %v409, %v430
  %v433 = vunpack.c.l.s4 1966171168
  %v434 = vunpack.c.0.s8 %v433
  %v435 = vlaneseq
  %v436 = vshrl.u32 %v435, 7
  %v437 = vsub.s32 %v434, %v436
  %v438 = vrot.slane %v410, %v437
  %v439 = vcombine.high %v417, %v417
  %v440 = vcombine.high %v424, %v424
  %v441 = vcombine.high %v431, %v431
  %v442 = vcombine.high %v438, %v438
  %v443 = vcombine.high %v161, %v161
  %v445 = vunpack.c.l.s4 1966171168
  %v446 = vunpack.c.0.s8 %v445
  %v447 = vlaneseq
  %v448 = vshrl.u32 %v447, 7
  %v449 = vsub.s32 %v446, %v448
  %v450 = vrot.slane %v161, %v449
  %v452 = vunpack.c.l.s4 1966171168
  %v453 = vunpack.c.0.s8 %v452
  %v454 = vlaneseq
  %v455 = vshrl.u32 %v454, 7
  %v456 = vsub.s32 %v453, %v455
  %v457 = vrot.slane %v443, %v456
  %v458 = vcombine.high %v450, %v450
  %v459 = vcombine.high %v457, %v457
  %v461 = vunpack.c.l.s4 1966171168
  %v462 = vunpack.c.0.s8 %v461
  %v463 = vlaneseq
  %v464 = vshrl.u32 %v463, 7
  %v465 = vsub.s32 %v462, %v464
  %v466 = vrot.slane %v450, %v465
  %v468 = vunpack.c.l.s4 1966171168
  %v469 = vunpack.c.0.s8 %v468
  %v470 = vlaneseq
  %v471 = vshrl.u32 %v470, 7
  %v472 = vsub.s32 %v469, %v471
  %v473 = vrot.slane %v457, %v472
  %v475 = vunpack.c.l.s4 1966171168
  %v476 = vunpack.c.0.s8 %v475
  %v477 = vlaneseq
  %v478 = vshrl.u32 %v477, 7
  %v479 = vsub.s32 %v476, %v478
  %v480 = vrot.slane %v458, %v479
  %v482 = vunpack.c.l.s4 1966171168
  %v483 = vunpack.c.0.s8 %v482
  %v484 = vlaneseq
  %v485 = vshrl.u32 %v484, 7
  %v486 = vsub.s32 %v483, %v485
  %v487 = vrot.slane %v459, %v486
  %v488 = vcombine.high %v466, %v466
  %v489 = vcombine.high %v473, %v473
  %v490 = vcombine.high %v480, %v480
  %v491 = vcombine.high %v487, %v487
  %v492 = vcombine.high %v167, %v167
  %v494 = vunpack.c.l.s4 1966171168
  %v495 = vunpack.c.0.s8 %v494
  %v496 = vlaneseq
  %v497 = vshrl.u32 %v496, 7
  %v498 = vsub.s32 %v495, %v497
  %v499 = vrot.slane %v167, %v498
  %v501 = vunpack.c.l.s4 1966171168
  %v502 = vunpack.c.0.s8 %v501
  %v503 = vlaneseq
  %v504 = vshrl.u32 %v503, 7
  %v505 = vsub.s32 %v502, %v504
  %v506 = vrot.slane %v492, %v505
  %v507 = vcombine.high %v499, %v499
  %v508 = vcombine.high %v506, %v506
  %v510 = vunpack.c.l.s4 1966171168
  %v511 = vunpack.c.0.s8 %v510
  %v512 = vlaneseq
  %v513 = vshrl.u32 %v512, 7
  %v514 = vsub.s32 %v511, %v513
  %v515 = vrot.slane %v499, %v514
  %v517 = vunpack.c.l.s4 1966171168
  %v518 = vunpack.c.0.s8 %v517
  %v519 = vlaneseq
  %v520 = vshrl.u32 %v519, 7
  %v521 = vsub.s32 %v518, %v520
  %v522 = vrot.slane %v506, %v521
  %v524 = vunpack.c.l.s4 1966171168
  %v525 = vunpack.c.0.s8 %v524
  %v526 = vlaneseq
  %v527 = vshrl.u32 %v526, 7
  %v528 = vsub.s32 %v525, %v527
  %v529 = vrot.slane %v507, %v528
  %v531 = vunpack.c.l.s4 1966171168
  %v532 = vunpack.c.0.s8 %v531
  %v533 = vlaneseq
  %v534 = vshrl.u32 %v533, 7
  %v535 = vsub.s32 %v532, %v534
  %v536 = vrot.slane %v508, %v535
  %v537 = vcombine.high %v515, %v515
  %v538 = vcombine.high %v522, %v522
  %v539 = vcombine.high %v529, %v529
  %v540 = vcombine.high %v536, %v536
  %v541 = vcombine.high %v173, %v173
  %v543 = vunpack.c.l.s4 1966171168
  %v544 = vunpack.c.0.s8 %v543
  %v545 = vlaneseq
  %v546 = vshrl.u32 %v545, 7
  %v547 = vsub.s32 %v544, %v546
  %v548 = vrot.slane %v173, %v547
  %v550 = vunpack.c.l.s4 1966171168
  %v551 = vunpack.c.0.s8 %v550
  %v552 = vlaneseq
  %v553 = vshrl.u32 %v552, 7
  %v554 = vsub.s32 %v551, %v553
  %v555 = vrot.slane %v541, %v554
  %v556 = vcombine.high %v548, %v548
  %v557 = vcombine.high %v555, %v555
  %v559 = vunpack.c.l.s4 1966171168
  %v560 = vunpack.c.0.s8 %v559
  %v561 = vlaneseq
  %v562 = vshrl.u32 %v561, 7
  %v563 = vsub.s32 %v560, %v562
  %v564 = vrot.slane %v548, %v563
  %v566 = vunpack.c.l.s4 1966171168
  %v567 = vunpack.c.0.s8 %v566
  %v568 = vlaneseq
  %v569 = vshrl.u32 %v568, 7
  %v570 = vsub.s32 %v567, %v569
  %v571 = vrot.slane %v555, %v570
  %v573 = vunpack.c.l.s4 1966171168
  %v574 = vunpack.c.0.s8 %v573
  %v575 = vlaneseq
  %v576 = vshrl.u32 %v575, 7
  %v577 = vsub.s32 %v574, %v576
  %v578 = vrot.slane %v556, %v577
  %v580 = vunpack.c.l.s4 1966171168
  %v581 = vunpack.c.0.s8 %v580
  %v582 = vlaneseq
  %v583 = vshrl.u32 %v582, 7
  %v584 = vsub.s32 %v581, %v583
  %v585 = vrot.slane %v557, %v584
  %v586 = vcombine.high %v564, %v564
  %v587 = vcombine.high %v571, %v571
  %v588 = vcombine.high %v578, %v578
  %v589 = vcombine.high %v585, %v585
  %v590 = vlaneseq
  %v591 = vshrl.u32 %v590, 7
  %v592 = vsub.s32 0, %v591
  %v593 = vrot.slane %v221, %v592
  %v594 = vlaneseq
  %v595 = vshrl.u32 %v594, 7
  %v596 = vsub.s32 0, %v595
  %v597 = vrot.slane %v235, %v596
  %v598 = vlaneseq
  %v599 = vshrl.u32 %v598, 7
  %v600 = vsub.s32 0, %v599
  %v601 = vrot.slane %v243, %v600
  %v602 = vlaneseq
  %v603 = vshrl.u32 %v602, 7
  %v604 = vsub.s32 0, %v603
  %v605 = vrot.slane %v245, %v604
  %v606 = vlaneseq
  %v607 = vshrl.u32 %v606, 7
  %v608 = vsub.s32 0, %v607
  %v609 = vrot.slane %v228, %v608
  %v610 = vlaneseq
  %v611 = vshrl.u32 %v610, 7
  %v612 = vsub.s32 0, %v611
  %v613 = vrot.slane %v242, %v612
  %v614 = vlaneseq
  %v615 = vshrl.u32 %v614, 7
  %v616 = vsub.s32 0, %v615
  %v617 = vrot.slane %v244, %v616
  %v618 = vlaneseq
  %v619 = vshrl.u32 %v618, 7
  %v620 = vsub.s32 0, %v619
  %v621 = vrot.slane %v246, %v620
  %v622 = vlaneseq
  %v623 = vshrl.u32 %v622, 7
  %v624 = vsub.s32 0, %v623
  %v625 = vrot.slane %v270, %v624
  %v626 = vlaneseq
  %v627 = vshrl.u32 %v626, 7
  %v628 = vsub.s32 0, %v627
  %v629 = vrot.slane %v284, %v628
  %v630 = vlaneseq
  %v631 = vshrl.u32 %v630, 7
  %v632 = vsub.s32 0, %v631
  %v633 = vrot.slane %v292, %v632
  %v634 = vlaneseq
  %v635 = vshrl.u32 %v634, 7
  %v636 = vsub.s32 0, %v635
  %v637 = vrot.slane %v294, %v636
  %v638 = vlaneseq
  %v639 = vshrl.u32 %v638, 7
  %v640 = vsub.s32 0, %v639
  %v641 = vrot.slane %v277, %v640
  %v642 = vlaneseq
  %v643 = vshrl.u32 %v642, 7
  %v644 = vsub.s32 0, %v643
  %v645 = vrot.slane %v291, %v644
  %v646 = vlaneseq
  %v647 = vshrl.u32 %v646, 7
  %v648 = vsub.s32 0, %v647
  %v649 = vrot.slane %v293, %v648
  %v650 = vlaneseq
  %v651 = vshrl.u32 %v650, 7
  %v652 = vsub.s32 0, %v651
  %v653 = vrot.slane %v295, %v652
  %v654 = vlaneseq
  %v655 = vshrl.u32 %v654, 7
  %v656 = vsub.s32 0, %v655
  %v657 = vrot.slane %v319, %v656
  %v658 = vlaneseq
  %v659 = vshrl.u32 %v658, 7
  %v660 = vsub.s32 0, %v659
  %v661 = vrot.slane %v333, %v660
  %v662 = vlaneseq
  %v663 = vshrl.u32 %v662, 7
  %v664 = vsub.s32 0, %v663
  %v665 = vrot.slane %v341, %v664
  %v666 = vlaneseq
  %v667 = vshrl.u32 %v666, 7
  %v668 = vsub.s32 0, %v667
  %v669 = vrot.slane %v343, %v668
  %v670 = vlaneseq
  %v671 = vshrl.u32 %v670, 7
  %v672 = vsub.s32 0, %v671
  %v673 = vrot.slane %v326, %v672
  %v674 = vlaneseq
  %v675 = vshrl.u32 %v674, 7
  %v676 = vsub.s32 0, %v675
  %v677 = vrot.slane %v340, %v676
  %v678 = vlaneseq
  %v679 = vshrl.u32 %v678, 7
  %v680 = vsub.s32 0, %v679
  %v681 = vrot.slane %v342, %v680
  %v682 = vlaneseq
  %v683 = vshrl.u32 %v682, 7
  %v684 = vsub.s32 0, %v683
  %v685 = vrot.slane %v344, %v684
  %v686 = vlaneseq
  %v687 = vshrl.u32 %v686, 7
  %v688 = vsub.s32 0, %v687
  %v689 = vrot.slane %v368, %v688
  %v690 = vlaneseq
  %v691 = vshrl.u32 %v690, 7
  %v692 = vsub.s32 0, %v691
  %v693 = vrot.slane %v382, %v692
  %v694 = vlaneseq
  %v695 = vshrl.u32 %v694, 7
  %v696 = vsub.s32 0, %v695
  %v697 = vrot.slane %v390, %v696
  %v698 = vlaneseq
  %v699 = vshrl.u32 %v698, 7
  %v700 = vsub.s32 0, %v699
  %v701 = vrot.slane %v392, %v700
  %v702 = vlaneseq
  %v703 = vshrl.u32 %v702, 7
  %v704 = vsub.s32 0, %v703
  %v705 = vrot.slane %v375, %v704
  %v706 = vlaneseq
  %v707 = vshrl.u32 %v706, 7
  %v708 = vsub.s32 0, %v707
  %v709 = vrot.slane %v389, %v708
  %v710 = vlaneseq
  %v711 = vshrl.u32 %v710, 7
  %v712 = vsub.s32 0, %v711
  %v713 = vrot.slane %v391, %v712
  %v714 = vlaneseq
  %v715 = vshrl.u32 %v714, 7
  %v716 = vsub.s32 0, %v715
  %v717 = vrot.slane %v393, %v716
  %v718 = vlaneseq
  %v719 = vshrl.u32 %v718, 7
  %v720 = vsub.s32 0, %v719
  %v721 = vrot.slane %v417, %v720
  %v722 = vlaneseq
  %v723 = vshrl.u32 %v722, 7
  %v724 = vsub.s32 0, %v723
  %v725 = vrot.slane %v431, %v724
  %v726 = vlaneseq
  %v727 = vshrl.u32 %v726, 7
  %v728 = vsub.s32 0, %v727
  %v729 = vrot.slane %v439, %v728
  %v730 = vlaneseq
  %v731 = vshrl.u32 %v730, 7
  %v732 = vsub.s32 0, %v731
  %v733 = vrot.slane %v441, %v732
  %v734 = vlaneseq
  %v735 = vshrl.u32 %v734, 7
  %v736 = vsub.s32 0, %v735
  %v737 = vrot.slane %v424, %v736
  %v738 = vlaneseq
  %v739 = vshrl.u32 %v738, 7
  %v740 = vsub.s32 0, %v739
  %v741 = vrot.slane %v438, %v740
  %v742 = vlaneseq
  %v743 = vshrl.u32 %v742, 7
  %v744 = vsub.s32 0, %v743
  %v745 = vrot.slane %v440, %v744
  %v746 = vlaneseq
  %v747 = vshrl.u32 %v746, 7
  %v748 = vsub.s32 0, %v747
  %v749 = vrot.slane %v442, %v748
  %v750 = vlaneseq
  %v751 = vshrl.u32 %v750, 7
  %v752 = vsub.s32 0, %v751
  %v753 = vrot.slane %v466, %v752
  %v754 = vlaneseq
  %v755 = vshrl.u32 %v754, 7
  %v756 = vsub.s32 0, %v755
  %v757 = vrot.slane %v480, %v756
  %v758 = vlaneseq
  %v759 = vshrl.u32 %v758, 7
  %v760 = vsub.s32 0, %v759
  %v761 = vrot.slane %v488, %v760
  %v762 = vlaneseq
  %v763 = vshrl.u32 %v762, 7
  %v764 = vsub.s32 0, %v763
  %v765 = vrot.slane %v490, %v764
  %v766 = vlaneseq
  %v767 = vshrl.u32 %v766, 7
  %v768 = vsub.s32 0, %v767
  %v769 = vrot.slane %v473, %v768
  %v770 = vlaneseq
  %v771 = vshrl.u32 %v770, 7
  %v772 = vsub.s32 0, %v771
  %v773 = vrot.slane %v487, %v772
  %v774 = vlaneseq
  %v775 = vshrl.u32 %v774, 7
  %v776 = vsub.s32 0, %v775
  %v777 = vrot.slane %v489, %v776
  %v778 = vlaneseq
  %v779 = vshrl.u32 %v778, 7
  %v780 = vsub.s32 0, %v779
  %v781 = vrot.slane %v491, %v780
  %v782 = vlaneseq
  %v783 = vshrl.u32 %v782, 7
  %v784 = vsub.s32 0, %v783
  %v785 = vrot.slane %v515, %v784
  %v786 = vlaneseq
  %v787 = vshrl.u32 %v786, 7
  %v788 = vsub.s32 0, %v787
  %v789 = vrot.slane %v529, %v788
  %v790 = vlaneseq
  %v791 = vshrl.u32 %v790, 7
  %v792 = vsub.s32 0, %v791
  %v793 = vrot.slane %v537, %v792
  %v794 = vlaneseq
  %v795 = vshrl.u32 %v794, 7
  %v796 = vsub.s32 0, %v795
  %v797 = vrot.slane %v539, %v796
  %v798 = vlaneseq
  %v799 = vshrl.u32 %v798, 7
  %v800 = vsub.s32 0, %v799
  %v801 = vrot.slane %v522, %v800
  %v802 = vlaneseq
  %v803 = vshrl.u32 %v802, 7
  %v804 = vsub.s32 0, %v803
  %v805 = vrot.slane %v536, %v804
  %v806 = vlaneseq
  %v807 = vshrl.u32 %v806, 7
  %v808 = vsub.s32 0, %v807
  %v809 = vrot.slane %v538, %v808
  %v810 = vlaneseq
  %v811 = vshrl.u32 %v810, 7
  %v812 = vsub.s32 0, %v811
  %v813 = vrot.slane %v540, %v812
  %v814 = vlaneseq
  %v815 = vshrl.u32 %v814, 7
  %v816 = vsub.s32 0, %v815
  %v817 = vrot.slane %v564, %v816
  %v818 = vlaneseq
  %v819 = vshrl.u32 %v818, 7
  %v820 = vsub.s32 0, %v819
  %v821 = vrot.slane %v578, %v820
  %v822 = vlaneseq
  %v823 = vshrl.u32 %v822, 7
  %v824 = vsub.s32 0, %v823
  %v825 = vrot.slane %v586, %v824
  %v826 = vlaneseq
  %v827 = vshrl.u32 %v826, 7
  %v828 = vsub.s32 0, %v827
  %v829 = vrot.slane %v588, %v828
  %v830 = vlaneseq
  %v831 = vshrl.u32 %v830, 7
  %v832 = vsub.s32 0, %v831
  %v833 = vrot.slane %v571, %v832
  %v834 = vlaneseq
  %v835 = vshrl.u32 %v834, 7
  %v836 = vsub.s32 0, %v835
  %v837 = vrot.slane %v585, %v836
  %v838 = vlaneseq
  %v839 = vshrl.u32 %v838, 7
  %v840 = vsub.s32 0, %v839
  %v841 = vrot.slane %v587, %v840
  %v842 = vlaneseq
  %v843 = vshrl.u32 %v842, 7
  %v844 = vsub.s32 0, %v843
  %v845 = vrot.slane %v589, %v844
  %v910 = vadd.f32 %v182, %v593
  %v911 = vadd.f32 %v182, %v597
  %v912 = vadd.f32 %v182, %v601
  %v913 = vadd.f32 %v182, %v605
  %v914 = vadd.f32 %v182, %v609
  %v915 = vadd.f32 %v182, %v613
  %v916 = vadd.f32 %v182, %v617
  %v917 = vadd.f32 %v182, %v621
  %v918 = vadd.f32 %v183, %v625
  %v919 = vadd.f32 %v183, %v629
  %v920 = vadd.f32 %v183, %v633
  %v921 = vadd.f32 %v183, %v637
  %v922 = vadd.f32 %v183, %v641
  %v923 = vadd.f32 %v183, %v645
  %v924 = vadd.f32 %v183, %v649
  %v925 = vadd.f32 %v183, %v653
  %v926 = vadd.f32 %v184, %v657
  %v927 = vadd.f32 %v184, %v661
  %v928 = vadd.f32 %v184, %v665
  %v929 = vadd.f32 %v184, %v669
  %v930 = vadd.f32 %v184, %v673
  %v931 = vadd.f32 %v184, %v677
  %v932 = vadd.f32 %v184, %v681
  %v933 = vadd.f32 %v184, %v685
  %v934 = vadd.f32 %v185, %v689
  %v935 = vadd.f32 %v185, %v693
  %v936 = vadd.f32 %v185, %v697
  %v937 = vadd.f32 %v185, %v701
  %v938 = vadd.f32 %v185, %v705
  %v939 = vadd.f32 %v185, %v709
  %v940 = vadd.f32 %v185, %v713
  %v941 = vadd.f32 %v185, %v717
  %v942 = vadd.f32 %v186, %v721
  %v943 = vadd.f32 %v186, %v725
  %v944 = vadd.f32 %v186, %v729
  %v945 = vadd.f32 %v186, %v733
  %v946 = vadd.f32 %v186, %v737
  %v947 = vadd.f32 %v186, %v741
  %v948 = vadd.f32 %v186, %v745
  %v949 = vadd.f32 %v186, %v749
  %v950 = vadd.f32 %v187, %v753
  %v951 = vadd.f32 %v187, %v757
  %v952 = vadd.f32 %v187, %v761
  %v953 = vadd.f32 %v187, %v765
  %v954 = vadd.f32 %v187, %v769
  %v955 = vadd.f32 %v187, %v773
  %v956 = vadd.f32 %v187, %v777
  %v957 = vadd.f32 %v187, %v781
  %v958 = vadd.f32 %v188, %v785
  %v959 = vadd.f32 %v188, %v789
  %v960 = vadd.f32 %v188, %v793
  %v961 = vadd.f32 %v188, %v797
  %v962 = vadd.f32 %v188, %v801
  %v963 = vadd.f32 %v188, %v805
  %v964 = vadd.f32 %v188, %v809
  %v965 = vadd.f32 %v188, %v813
  %v966 = vadd.f32 %v189, %v817
  %v967 = vadd.f32 %v189, %v821
  %v968 = vadd.f32 %v189, %v825
  %v969 = vadd.f32 %v189, %v829
  %v970 = vadd.f32 %v189, %v833
  %v971 = vadd.f32 %v189, %v837
  %v972 = vadd.f32 %v189, %v841
  %v973 = vadd.f32 %v189, %v845
  %v974 = vmax.f32 %v910, 0.0
  %v975 = vmax.f32 %v911, 0.0
  %v976 = vmax.f32 %v912, 0.0
  %v977 = vmax.f32 %v913, 0.0
  %v978 = vmax.f32 %v914, 0.0
  %v979 = vmax.f32 %v915, 0.0
  %v980 = vmax.f32 %v916, 0.0
  %v981 = vmax.f32 %v917, 0.0
  %v982 = vmax.f32 %v918, 0.0
  %v983 = vmax.f32 %v919, 0.0
  %v984 = vmax.f32 %v920, 0.0
  %v985 = vmax.f32 %v921, 0.0
  %v986 = vmax.f32 %v922, 0.0
  %v987 = vmax.f32 %v923, 0.0
  %v988 = vmax.f32 %v924, 0.0
  %v989 = vmax.f32 %v925, 0.0
  %v990 = vmax.f32 %v926, 0.0
  %v991 = vmax.f32 %v927, 0.0
  %v992 = vmax.f32 %v928, 0.0
  %v993 = vmax.f32 %v929, 0.0
  %v994 = vmax.f32 %v930, 0.0
  %v995 = vmax.f32 %v931, 0.0
  %v996 = vmax.f32 %v932, 0.0
  %v997 = vmax.f32 %v933, 0.0
  %v998 = vmax.f32 %v934, 0.0
  %v999 = vmax.f32 %v935, 0.0
  %v1000 = vmax.f32 %v936, 0.0
  %v1001 = vmax.f32 %v937, 0.0
  %v1002 = vmax.f32 %v938, 0.0
  %v1003 = vmax.f32 %v939, 0.0
  %v1004 = vmax.f32 %v940, 0.0
  %v1005 = vmax.f32 %v941, 0.0
  %v1006 = vmax.f32 %v942, 0.0
  %v1007 = vmax.f32 %v943, 0.0
  %v1008 = vmax.f32 %v944, 0.0
  %v1009 = vmax.f32 %v945, 0.0
  %v1010 = vmax.f32 %v946, 0.0
  %v1011 = vmax.f32 %v947, 0.0
  %v1012 = vmax.f32 %v948, 0.0
  %v1013 = vmax.f32 %v949, 0.0
  %v1014 = vmax.f32 %v950, 0.0
  %v1015 = vmax.f32 %v951, 0.0
  %v1016 = vmax.f32 %v952, 0.0
  %v1017 = vmax.f32 %v953, 0.0
  %v1018 = vmax.f32 %v954, 0.0
  %v1019 = vmax.f32 %v955, 0.0
  %v1020 = vmax.f32 %v956, 0.0
  %v1021 = vmax.f32 %v957, 0.0
  %v1022 = vmax.f32 %v958, 0.0
  %v1023 = vmax.f32 %v959, 0.0
  %v1024 = vmax.f32 %v960, 0.0
  %v1025 = vmax.f32 %v961, 0.0
  %v1026 = vmax.f32 %v962, 0.0
  %v1027 = vmax.f32 %v963, 0.0
  %v1028 = vmax.f32 %v964, 0.0
  %v1029 = vmax.f32 %v965, 0.0
  %v1030 = vmax.f32 %v966, 0.0
  %v1031 = vmax.f32 %v967, 0.0
  %v1032 = vmax.f32 %v968, 0.0
  %v1033 = vmax.f32 %v969, 0.0
  %v1034 = vmax.f32 %v970, 0.0
  %v1035 = vmax.f32 %v971, 0.0
  %v1036 = vmax.f32 %v972, 0.0
  %v1037 = vmax.f32 %v973, 0.0
  %v1038 = vpack.c.bf16 %v975, %v974
  %v1039 = vpack.c.bf16 %v977, %v976
  %v1040 = vpack.c.bf16 %v979, %v978
  %v1041 = vpack.c.bf16 %v981, %v980
  %v1042 = vpack.c.bf16 %v983, %v982
  %v1043 = vpack.c.bf16 %v985, %v984
  %v1044 = vpack.c.bf16 %v987, %v986
  %v1045 = vpack.c.bf16 %v989, %v988
  %v1046 = vpack.c.bf16 %v991, %v990
  %v1047 = vpack.c.bf16 %v993, %v992
  %v1048 = vpack.c.bf16 %v995, %v994
  %v1049 = vpack.c.bf16 %v997, %v996
  %v1050 = vpack.c.bf16 %v999, %v998
  %v1051 = vpack.c.bf16 %v1001, %v1000
  %v1052 = vpack.c.bf16 %v1003, %v1002
  %v1053 = vpack.c.bf16 %v1005, %v1004
  %v1054 = vpack.c.bf16 %v1007, %v1006
  %v1055 = vpack.c.bf16 %v1009, %v1008
  %v1056 = vpack.c.bf16 %v1011, %v1010
  %v1057 = vpack.c.bf16 %v1013, %v1012
  %v1058 = vpack.c.bf16 %v1015, %v1014
  %v1059 = vpack.c.bf16 %v1017, %v1016
  %v1060 = vpack.c.bf16 %v1019, %v1018
  %v1061 = vpack.c.bf16 %v1021, %v1020
  %v1062 = vpack.c.bf16 %v1023, %v1022
  %v1063 = vpack.c.bf16 %v1025, %v1024
  %v1064 = vpack.c.bf16 %v1027, %v1026
  %v1065 = vpack.c.bf16 %v1029, %v1028
  %v1066 = vpack.c.bf16 %v1031, %v1030
  %v1067 = vpack.c.bf16 %v1033, %v1032
  %v1068 = vpack.c.bf16 %v1035, %v1034
  %v1069 = vpack.c.bf16 %v1037, %v1036
  %v1070 = vld [vmem:[%s3] sm:$0xf]
  %v1071 = vld [vmem:[%s3 + $0x4] sm:$0xf]
  %v1072 = vld [vmem:[%s3 + $0x8] sm:$0xf]
  %v1073 = vld [vmem:[%s3 + $0xc] sm:$0xf]
  %v1074 = vld [vmem:[%s3 + $0x10] sm:$0xf]
  %v1075 = vld [vmem:[%s3 + $0x14] sm:$0xf]
  %v1076 = vld [vmem:[%s3 + $0x18] sm:$0xf]
  %v1077 = vld [vmem:[%s3 + $0x1c] sm:$0xf]
  %v1078 = vld [vmem:[%s3 + $0x20] sm:$0xf]
  %v1079 = vld [vmem:[%s3 + $0x24] sm:$0xf]
  %v1080 = vld [vmem:[%s3 + $0x28] sm:$0xf]
  %v1081 = vld [vmem:[%s3 + $0x2c] sm:$0xf]
  %v1082 = vld [vmem:[%s3 + $0x30] sm:$0xf]
  %v1083 = vld [vmem:[%s3 + $0x34] sm:$0xf]
  %v1084 = vld [vmem:[%s3 + $0x38] sm:$0xf]
  %v1085 = vld [vmem:[%s3 + $0x3c] sm:$0xf]
  %v1086 = vld [vmem:[%s4] sm:$0x1]
  %v1088 = vlaneseq
  %v1089 = vshrl.u32 %v1088, 7
  %v1090 = vsub.s32 0, %v1089
  %v1091 = vrot.slane %v1086, %v1090
  %v1109 = vunpack.c.l.b16 %v1070
  %v1110 = vunpack.c.l.b16 %v1071
  %v1111 = vunpack.c.l.b16 %v1072
  %v1112 = vunpack.c.l.b16 %v1073
  %v1113 = vunpack.c.l.b16 %v1074
  %v1114 = vunpack.c.l.b16 %v1075
  %v1115 = vunpack.c.l.b16 %v1076
  %v1116 = vunpack.c.l.b16 %v1077
  %v1117 = vunpack.c.l.b16 %v1078
  %v1118 = vunpack.c.l.b16 %v1079
  %v1119 = vunpack.c.l.b16 %v1080
  %v1120 = vunpack.c.l.b16 %v1081
  %v1121 = vunpack.c.l.b16 %v1082
  %v1122 = vunpack.c.l.b16 %v1083
  %v1123 = vunpack.c.l.b16 %v1084
  %v1124 = vunpack.c.l.b16 %v1085
  %v1125 = vpack.c.b16 %v1110, %v1109
  %v1126 = vpack.c.b16 %v1112, %v1111
  %v1127 = vpack.c.b16 %v1114, %v1113
  %v1128 = vpack.c.b16 %v1116, %v1115
  %v1129 = vpack.c.b16 %v1118, %v1117
  %v1130 = vpack.c.b16 %v1120, %v1119
  %v1131 = vpack.c.b16 %v1122, %v1121
  %v1132 = vpack.c.b16 %v1124, %v1123
  %1141 = vmatprep.subr.bf16.mxu0 0
  %1142 = vmatpush1.bf16.msra.mxu0 %v1125
  %1143 = vmatprep.subr.bf16.mxu0 0
  %1144 = vmatpush1.bf16.msra.mxu0 %v1126
  %1145 = vmatprep.subr.bf16.mxu0 0
  %1146 = vmatpush1.bf16.msra.mxu0 %v1127
  %1147 = vmatprep.subr.bf16.mxu0 0
  %1148 = vmatpush1.bf16.msra.mxu0 %v1128
  %1149 = vmatprep.subr.bf16.mxu0 0
  %1150 = vmatpush1.bf16.msra.mxu0 %v1129
  %1151 = vmatprep.subr.bf16.mxu0 0
  %1152 = vmatpush1.bf16.msra.mxu0 %v1130
  %1153 = vmatprep.subr.bf16.mxu0 0
  %1154 = vmatpush1.bf16.msra.mxu0 %v1131
  %1155 = vmatprep.subr.bf16.mxu0 0
  %1156 = vmatpush1.bf16.msra.mxu0 %v1132
  %1157 = vmatprep.subr.bf16.mxu0 0
  %1158 = vmatpush1.bf16.msra.mxu0 0
  %1159 = vmatprep.subr.bf16.mxu0 0
  %1160 = vmatpush1.bf16.msra.mxu0 0
  %1161 = vmatprep.subr.bf16.mxu0 0
  %1162 = vmatpush1.bf16.msra.mxu0 0
  %1163 = vmatprep.subr.bf16.mxu0 0
  %1164 = vmatpush1.bf16.msra.mxu0 0
  %1165 = vmatprep.subr.bf16.mxu0 0
  %1166 = vmatpush1.bf16.msra.mxu0 0
  %1167 = vmatprep.subr.bf16.mxu0 0
  %1168 = vmatpush1.bf16.msra.mxu0 0
  %1169 = vmatprep.subr.bf16.mxu0 0
  %1170 = vmatpush1.bf16.msra.mxu0 0
  %1171 = vmatprep.subr.bf16.mxu0 0
  %1172 = vmatpush1.bf16.msra.mxu0 0
  %1173 = vmatprep.mubr.bf16.mxu0 0
  %1174 = vmatmul.mubr.bf16.gmra.mrb[0].mxu0 %v1038
  %v1175 = vpop.f32.mrb[0].mxu0
  %v1176 = vadd.f32 %v1091, %v1175
  %v1177 = vpop.f32.mrb[0].mxu0
  %v1178 = vpop.f32.mrb[0].mxu0
  %v1179 = vadd.f32 %v1091, %v1178
  %v1180 = vpop.f32.mrb[0].mxu0
  %1181 = vmatprep.mubr.bf16.mxu0 0
  %1182 = vmatmul.mubr.bf16.gmra.mrb[0].mxu0 %v1039
  %v1183 = vpop.f32.mrb[0].mxu0
  %v1184 = vadd.f32 %v1091, %v1183
  %v1185 = vpop.f32.mrb[0].mxu0
  %v1186 = vpop.f32.mrb[0].mxu0
  %v1187 = vadd.f32 %v1091, %v1186
  %v1188 = vpop.f32.mrb[0].mxu0
  %1189 = vmatprep.mubr.bf16.mxu0 0
  %1190 = vmatmul.mubr.bf16.gmra.mrb[0].mxu0 %v1040
  %v1191 = vpop.f32.mrb[0].mxu0
  %v1192 = vadd.f32 %v1091, %v1191
  %v1193 = vpop.f32.mrb[0].mxu0
  %v1194 = vpop.f32.mrb[0].mxu0
  %v1195 = vadd.f32 %v1091, %v1194
  %v1196 = vpop.f32.mrb[0].mxu0
  %1197 = vmatprep.mubr.bf16.mxu0 0
  %1198 = vmatmul.mubr.bf16.gmra.mrb[0].mxu0 %v1041
  %v1199 = vpop.f32.mrb[0].mxu0
  %v1200 = vadd.f32 %v1091, %v1199
  %v1201 = vpop.f32.mrb[0].mxu0
  %v1202 = vpop.f32.mrb[0].mxu0
  %v1203 = vadd.f32 %v1091, %v1202
  %v1204 = vpop.f32.mrb[0].mxu0
  %1205 = vmatprep.mubr.bf16.mxu0 0
  %1206 = vmatmul.mubr.bf16.gmra.mrb[0].mxu0 %v1042
  %v1207 = vpop.f32.mrb[0].mxu0
  %v1208 = vadd.f32 %v1091, %v1207
  %v1209 = vpop.f32.mrb[0].mxu0
  %v1210 = vpop.f32.mrb[0].mxu0
  %v1211 = vadd.f32 %v1091, %v1210
  %v1212 = vpop.f32.mrb[0].mxu0
  %1213 = vmatprep.mubr.bf16.mxu0 0
  %1214 = vmatmul.mubr.bf16.gmra.mrb[0].mxu0 %v1043
  %v1215 = vpop.f32.mrb[0].mxu0
  %v1216 = vadd.f32 %v1091, %v1215
  %v1217 = vpop.f32.mrb[0].mxu0
  %v1218 = vpop.f32.mrb[0].mxu0
  %v1219 = vadd.f32 %v1091, %v1218
  %v1220 = vpop.f32.mrb[0].mxu0
  %1221 = vmatprep.mubr.bf16.mxu0 0
  %1222 = vmatmul.mubr.bf16.gmra.mrb[0].mxu0 %v1044
  %v1223 = vpop.f32.mrb[0].mxu0
  %v1224 = vadd.f32 %v1091, %v1223
  %v1225 = vpop.f32.mrb[0].mxu0
  %v1226 = vpop.f32.mrb[0].mxu0
  %v1227 = vadd.f32 %v1091, %v1226
  %v1228 = vpop.f32.mrb[0].mxu0
  %1229 = vmatprep.mubr.bf16.mxu0 0
  %1230 = vmatmul.mubr.bf16.gmra.mrb[0].mxu0 %v1045
  %v1231 = vpop.f32.mrb[0].mxu0
  %v1232 = vadd.f32 %v1091, %v1231
  %v1233 = vpop.f32.mrb[0].mxu0
  %v1234 = vpop.f32.mrb[0].mxu0
  %v1235 = vadd.f32 %v1091, %v1234
  %v1236 = vpop.f32.mrb[0].mxu0
  %1237 = vmatprep.mubr.bf16.mxu0 0
  %1238 = vmatmul.mubr.bf16.gmra.mrb[0].mxu0 %v1046
  %v1239 = vpop.f32.mrb[0].mxu0
  %v1240 = vadd.f32 %v1091, %v1239
  %v1241 = vpop.f32.mrb[0].mxu0
  %v1242 = vpop.f32.mrb[0].mxu0
  %v1243 = vadd.f32 %v1091, %v1242
  %v1244 = vpop.f32.mrb[0].mxu0
  %1245 = vmatprep.mubr.bf16.mxu0 0
  %1246 = vmatmul.mubr.bf16.gmra.mrb[0].mxu0 %v1047
  %v1247 = vpop.f32.mrb[0].mxu0
  %v1248 = vadd.f32 %v1091, %v1247
  %v1249 = vpop.f32.mrb[0].mxu0
  %v1250 = vpop.f32.mrb[0].mxu0
  %v1251 = vadd.f32 %v1091, %v1250
  %v1252 = vpop.f32.mrb[0].mxu0
  %1253 = vmatprep.mubr.bf16.mxu0 0
  %1254 = vmatmul.mubr.bf16.gmra.mrb[0].mxu0 %v1048
  %v1255 = vpop.f32.mrb[0].mxu0
  %v1256 = vadd.f32 %v1091, %v1255
  %v1257 = vpop.f32.mrb[0].mxu0
  %v1258 = vpop.f32.mrb[0].mxu0
  %v1259 = vadd.f32 %v1091, %v1258
  %v1260 = vpop.f32.mrb[0].mxu0
  %1261 = vmatprep.mubr.bf16.mxu0 0
  %1262 = vmatmul.mubr.bf16.gmra.mrb[0].mxu0 %v1049
  %v1263 = vpop.f32.mrb[0].mxu0
  %v1264 = vadd.f32 %v1091, %v1263
  %v1265 = vpop.f32.mrb[0].mxu0
  %v1266 = vpop.f32.mrb[0].mxu0
  %v1267 = vadd.f32 %v1091, %v1266
  %v1268 = vpop.f32.mrb[0].mxu0
  %1269 = vmatprep.mubr.bf16.mxu0 0
  %1270 = vmatmul.mubr.bf16.gmra.mrb[0].mxu0 %v1050
  %v1271 = vpop.f32.mrb[0].mxu0
  %v1272 = vadd.f32 %v1091, %v1271
  %v1273 = vpop.f32.mrb[0].mxu0
  %v1274 = vpop.f32.mrb[0].mxu0
  %v1275 = vadd.f32 %v1091, %v1274
  %v1276 = vpop.f32.mrb[0].mxu0
  %1277 = vmatprep.mubr.bf16.mxu0 0
  %1278 = vmatmul.mubr.bf16.gmra.mrb[0].mxu0 %v1051
  %v1279 = vpop.f32.mrb[0].mxu0
  %v1280 = vadd.f32 %v1091, %v1279
  %v1281 = vpop.f32.mrb[0].mxu0
  %v1282 = vpop.f32.mrb[0].mxu0
  %v1283 = vadd.f32 %v1091, %v1282
  %v1284 = vpop.f32.mrb[0].mxu0
  %1285 = vmatprep.mubr.bf16.mxu0 0
  %1286 = vmatmul.mubr.bf16.gmra.mrb[0].mxu0 %v1052
  %v1287 = vpop.f32.mrb[0].mxu0
  %v1288 = vadd.f32 %v1091, %v1287
  %v1289 = vpop.f32.mrb[0].mxu0
  %v1290 = vpop.f32.mrb[0].mxu0
  %v1291 = vadd.f32 %v1091, %v1290
  %v1292 = vpop.f32.mrb[0].mxu0
  %1293 = vmatprep.mubr.bf16.mxu0 0
  %1294 = vmatmul.mubr.bf16.gmra.mrb[0].mxu0 %v1053
  %v1295 = vpop.f32.mrb[0].mxu0
  %v1296 = vadd.f32 %v1091, %v1295
  %v1297 = vpop.f32.mrb[0].mxu0
  %v1298 = vpop.f32.mrb[0].mxu0
  %v1299 = vadd.f32 %v1091, %v1298
  %v1300 = vpop.f32.mrb[0].mxu0
  %1301 = vmatprep.mubr.bf16.mxu0 0
  %1302 = vmatmul.mubr.bf16.gmra.mrb[0].mxu0 %v1054
  %v1303 = vpop.f32.mrb[0].mxu0
  %v1304 = vadd.f32 %v1091, %v1303
  %v1305 = vpop.f32.mrb[0].mxu0
  %v1306 = vpop.f32.mrb[0].mxu0
  %v1307 = vadd.f32 %v1091, %v1306
  %v1308 = vpop.f32.mrb[0].mxu0
  %1309 = vmatprep.mubr.bf16.mxu0 0
  %1310 = vmatmul.mubr.bf16.gmra.mrb[0].mxu0 %v1055
  %v1311 = vpop.f32.mrb[0].mxu0
  %v1312 = vadd.f32 %v1091, %v1311
  %v1313 = vpop.f32.mrb[0].mxu0
  %v1314 = vpop.f32.mrb[0].mxu0
  %v1315 = vadd.f32 %v1091, %v1314
  %v1316 = vpop.f32.mrb[0].mxu0
  %1317 = vmatprep.mubr.bf16.mxu0 0
  %1318 = vmatmul.mubr.bf16.gmra.mrb[0].mxu0 %v1056
  %v1319 = vpop.f32.mrb[0].mxu0
  %v1320 = vadd.f32 %v1091, %v1319
  %v1321 = vpop.f32.mrb[0].mxu0
  %v1322 = vpop.f32.mrb[0].mxu0
  %v1323 = vadd.f32 %v1091, %v1322
  %v1324 = vpop.f32.mrb[0].mxu0
  %1325 = vmatprep.mubr.bf16.mxu0 0
  %1326 = vmatmul.mubr.bf16.gmra.mrb[0].mxu0 %v1057
  %v1327 = vpop.f32.mrb[0].mxu0
  %v1328 = vadd.f32 %v1091, %v1327
  %v1329 = vpop.f32.mrb[0].mxu0
  %v1330 = vpop.f32.mrb[0].mxu0
  %v1331 = vadd.f32 %v1091, %v1330
  %v1332 = vpop.f32.mrb[0].mxu0
  %1333 = vmatprep.mubr.bf16.mxu0 0
  %1334 = vmatmul.mubr.bf16.gmra.mrb[0].mxu0 %v1058
  %v1335 = vpop.f32.mrb[0].mxu0
  %v1336 = vadd.f32 %v1091, %v1335
  %v1337 = vpop.f32.mrb[0].mxu0
  %v1338 = vpop.f32.mrb[0].mxu0
  %v1339 = vadd.f32 %v1091, %v1338
  %v1340 = vpop.f32.mrb[0].mxu0
  %1341 = vmatprep.mubr.bf16.mxu0 0
  %1342 = vmatmul.mubr.bf16.gmra.mrb[0].mxu0 %v1059
  %v1343 = vpop.f32.mrb[0].mxu0
  %v1344 = vadd.f32 %v1091, %v1343
  %v1345 = vpop.f32.mrb[0].mxu0
  %v1346 = vpop.f32.mrb[0].mxu0
  %v1347 = vadd.f32 %v1091, %v1346
  %v1348 = vpop.f32.mrb[0].mxu0
  %1349 = vmatprep.mubr.bf16.mxu0 0
  %1350 = vmatmul.mubr.bf16.gmra.mrb[0].mxu0 %v1060
  %v1351 = vpop.f32.mrb[0].mxu0
  %v1352 = vadd.f32 %v1091, %v1351
  %v1353 = vpop.f32.mrb[0].mxu0
  %v1354 = vpop.f32.mrb[0].mxu0
  %v1355 = vadd.f32 %v1091, %v1354
  %v1356 = vpop.f32.mrb[0].mxu0
  %1357 = vmatprep.mubr.bf16.mxu0 0
  %1358 = vmatmul.mubr.bf16.gmra.mrb[0].mxu0 %v1061
  %v1359 = vpop.f32.mrb[0].mxu0
  %v1360 = vadd.f32 %v1091, %v1359
  %v1361 = vpop.f32.mrb[0].mxu0
  %v1362 = vpop.f32.mrb[0].mxu0
  %v1363 = vadd.f32 %v1091, %v1362
  %v1364 = vpop.f32.mrb[0].mxu0
  %1365 = vmatprep.mubr.bf16.mxu0 0
  %1366 = vmatmul.mubr.bf16.gmra.mrb[0].mxu0 %v1062
  %v1367 = vpop.f32.mrb[0].mxu0
  %v1368 = vadd.f32 %v1091, %v1367
  %v1369 = vpop.f32.mrb[0].mxu0
  %v1370 = vpop.f32.mrb[0].mxu0
  %v1371 = vadd.f32 %v1091, %v1370
  %v1372 = vpop.f32.mrb[0].mxu0
  %1373 = vmatprep.mubr.bf16.mxu0 0
  %1374 = vmatmul.mubr.bf16.gmra.mrb[0].mxu0 %v1063
  %v1375 = vpop.f32.mrb[0].mxu0
  %v1376 = vadd.f32 %v1091, %v1375
  %v1377 = vpop.f32.mrb[0].mxu0
  %v1378 = vpop.f32.mrb[0].mxu0
  %v1379 = vadd.f32 %v1091, %v1378
  %v1380 = vpop.f32.mrb[0].mxu0
  %1381 = vmatprep.mubr.bf16.mxu0 0
  %1382 = vmatmul.mubr.bf16.gmra.mrb[0].mxu0 %v1064
  %v1383 = vpop.f32.mrb[0].mxu0
  %v1384 = vadd.f32 %v1091, %v1383
  %v1385 = vpop.f32.mrb[0].mxu0
  %v1386 = vpop.f32.mrb[0].mxu0
  %v1387 = vadd.f32 %v1091, %v1386
  %v1388 = vpop.f32.mrb[0].mxu0
  %1389 = vmatprep.mubr.bf16.mxu0 0
  %1390 = vmatmul.mubr.bf16.gmra.mrb[0].mxu0 %v1065
  %v1391 = vpop.f32.mrb[0].mxu0
  %v1392 = vadd.f32 %v1091, %v1391
  %v1393 = vpop.f32.mrb[0].mxu0
  %v1394 = vpop.f32.mrb[0].mxu0
  %v1395 = vadd.f32 %v1091, %v1394
  %v1396 = vpop.f32.mrb[0].mxu0
  %1397 = vmatprep.mubr.bf16.mxu0 0
  %1398 = vmatmul.mubr.bf16.gmra.mrb[0].mxu0 %v1066
  %v1399 = vpop.f32.mrb[0].mxu0
  %v1400 = vadd.f32 %v1091, %v1399
  %v1401 = vpop.f32.mrb[0].mxu0
  %v1402 = vpop.f32.mrb[0].mxu0
  %v1403 = vadd.f32 %v1091, %v1402
  %v1404 = vpop.f32.mrb[0].mxu0
  %1405 = vmatprep.mubr.bf16.mxu0 0
  %1406 = vmatmul.mubr.bf16.gmra.mrb[0].mxu0 %v1067
  %v1407 = vpop.f32.mrb[0].mxu0
  %v1408 = vadd.f32 %v1091, %v1407
  %v1409 = vpop.f32.mrb[0].mxu0
  %v1410 = vpop.f32.mrb[0].mxu0
  %v1411 = vadd.f32 %v1091, %v1410
  %v1412 = vpop.f32.mrb[0].mxu0
  %1413 = vmatprep.mubr.bf16.mxu0 0
  %1414 = vmatmul.mubr.bf16.gmra.mrb[0].mxu0 %v1068
  %v1415 = vpop.f32.mrb[0].mxu0
  %v1416 = vadd.f32 %v1091, %v1415
  %v1417 = vpop.f32.mrb[0].mxu0
  %v1418 = vpop.f32.mrb[0].mxu0
  %v1419 = vadd.f32 %v1091, %v1418
  %v1420 = vpop.f32.mrb[0].mxu0
  %1421 = vmatprep.mubr.bf16.mxu0 0
  %1422 = vmatmul.mubr.bf16.gmra.mrb[0].mxu0 %v1069
  %v1423 = vpop.f32.mrb[0].mxu0
  %v1424 = vadd.f32 %v1091, %v1423
  %v1425 = vpop.f32.mrb[0].mxu0
  %v1426 = vpop.f32.mrb[0].mxu0
  %v1427 = vadd.f32 %v1091, %v1426
  %v1428 = vpop.f32.mrb[0].mxu0
  %1429 = vdwg.mxu0
  %v1430 = vmax.f32 %v1176, 0.0
  %v1431 = vmax.f32 %v1179, 0.0
  %v1432 = vmax.f32 %v1184, 0.0
  %v1433 = vmax.f32 %v1187, 0.0
  %v1434 = vmax.f32 %v1192, 0.0
  %v1435 = vmax.f32 %v1195, 0.0
  %v1436 = vmax.f32 %v1200, 0.0
  %v1437 = vmax.f32 %v1203, 0.0
  %v1438 = vmax.f32 %v1208, 0.0
  %v1439 = vmax.f32 %v1211, 0.0
  %v1440 = vmax.f32 %v1216, 0.0
  %v1441 = vmax.f32 %v1219, 0.0
  %v1442 = vmax.f32 %v1224, 0.0
  %v1443 = vmax.f32 %v1227, 0.0
  %v1444 = vmax.f32 %v1232, 0.0
  %v1445 = vmax.f32 %v1235, 0.0
  %v1446 = vmax.f32 %v1240, 0.0
  %v1447 = vmax.f32 %v1243, 0.0
  %v1448 = vmax.f32 %v1248, 0.0
  %v1449 = vmax.f32 %v1251, 0.0
  %v1450 = vmax.f32 %v1256, 0.0
  %v1451 = vmax.f32 %v1259, 0.0
  %v1452 = vmax.f32 %v1264, 0.0
  %v1453 = vmax.f32 %v1267, 0.0
  %v1454 = vmax.f32 %v1272, 0.0
  %v1455 = vmax.f32 %v1275, 0.0
  %v1456 = vmax.f32 %v1280, 0.0
  %v1457 = vmax.f32 %v1283, 0.0
  %v1458 = vmax.f32 %v1288, 0.0
  %v1459 = vmax.f32 %v1291, 0.0
  %v1460 = vmax.f32 %v1296, 0.0
  %v1461 = vmax.f32 %v1299, 0.0
  %v1462 = vmax.f32 %v1304, 0.0
  %v1463 = vmax.f32 %v1307, 0.0
  %v1464 = vmax.f32 %v1312, 0.0
  %v1465 = vmax.f32 %v1315, 0.0
  %v1466 = vmax.f32 %v1320, 0.0
  %v1467 = vmax.f32 %v1323, 0.0
  %v1468 = vmax.f32 %v1328, 0.0
  %v1469 = vmax.f32 %v1331, 0.0
  %v1470 = vmax.f32 %v1336, 0.0
  %v1471 = vmax.f32 %v1339, 0.0
  %v1472 = vmax.f32 %v1344, 0.0
  %v1473 = vmax.f32 %v1347, 0.0
  %v1474 = vmax.f32 %v1352, 0.0
  %v1475 = vmax.f32 %v1355, 0.0
  %v1476 = vmax.f32 %v1360, 0.0
  %v1477 = vmax.f32 %v1363, 0.0
  %v1478 = vmax.f32 %v1368, 0.0
  %v1479 = vmax.f32 %v1371, 0.0
  %v1480 = vmax.f32 %v1376, 0.0
  %v1481 = vmax.f32 %v1379, 0.0
  %v1482 = vmax.f32 %v1384, 0.0
  %v1483 = vmax.f32 %v1387, 0.0
  %v1484 = vmax.f32 %v1392, 0.0
  %v1485 = vmax.f32 %v1395, 0.0
  %v1486 = vmax.f32 %v1400, 0.0
  %v1487 = vmax.f32 %v1403, 0.0
  %v1488 = vmax.f32 %v1408, 0.0
  %v1489 = vmax.f32 %v1411, 0.0
  %v1490 = vmax.f32 %v1416, 0.0
  %v1491 = vmax.f32 %v1419, 0.0
  %v1492 = vmax.f32 %v1424, 0.0
  %v1493 = vmax.f32 %v1427, 0.0
  %v1494 = vadd.f32 %v1430, %v1431
  %v1495 = vadd.f32 %v1494, %v1432
  %v1496 = vadd.f32 %v1495, %v1433
  %v1497 = vadd.f32 %v1496, %v1434
  %v1498 = vadd.f32 %v1497, %v1435
  %v1499 = vadd.f32 %v1498, %v1436
  %v1500 = vadd.f32 %v1499, %v1437
  %v1501 = vrot.slane %v1500, 4
  %v1502 = vadd.f32 %v1500, %v1501
  %v1503 = vrot.slane %v1502, 2
  %v1504 = vadd.f32 %v1502, %v1503
  %v1505 = vrot.slane %v1504, 1
  %v1506 = vadd.f32 %v1504, %v1505
  %v1507 = vadd.f32 %v1438, %v1439
  %v1508 = vadd.f32 %v1507, %v1440
  %v1509 = vadd.f32 %v1508, %v1441
  %v1510 = vadd.f32 %v1509, %v1442
  %v1511 = vadd.f32 %v1510, %v1443
  %v1512 = vadd.f32 %v1511, %v1444
  %v1513 = vadd.f32 %v1512, %v1445
  %v1514 = vrot.slane %v1513, 4
  %v1515 = vadd.f32 %v1513, %v1514
  %v1516 = vrot.slane %v1515, 2
  %v1517 = vadd.f32 %v1515, %v1516
  %v1518 = vrot.slane %v1517, 1
  %v1519 = vadd.f32 %v1517, %v1518
  %v1520 = vadd.f32 %v1446, %v1447
  %v1521 = vadd.f32 %v1520, %v1448
  %v1522 = vadd.f32 %v1521, %v1449
  %v1523 = vadd.f32 %v1522, %v1450
  %v1524 = vadd.f32 %v1523, %v1451
  %v1525 = vadd.f32 %v1524, %v1452
  %v1526 = vadd.f32 %v1525, %v1453
  %v1527 = vrot.slane %v1526, 4
  %v1528 = vadd.f32 %v1526, %v1527
  %v1529 = vrot.slane %v1528, 2
  %v1530 = vadd.f32 %v1528, %v1529
  %v1531 = vrot.slane %v1530, 1
  %v1532 = vadd.f32 %v1530, %v1531
  %v1533 = vadd.f32 %v1454, %v1455
  %v1534 = vadd.f32 %v1533, %v1456
  %v1535 = vadd.f32 %v1534, %v1457
  %v1536 = vadd.f32 %v1535, %v1458
  %v1537 = vadd.f32 %v1536, %v1459
  %v1538 = vadd.f32 %v1537, %v1460
  %v1539 = vadd.f32 %v1538, %v1461
  %v1540 = vrot.slane %v1539, 4
  %v1541 = vadd.f32 %v1539, %v1540
  %v1542 = vrot.slane %v1541, 2
  %v1543 = vadd.f32 %v1541, %v1542
  %v1544 = vrot.slane %v1543, 1
  %v1545 = vadd.f32 %v1543, %v1544
  %v1546 = vadd.f32 %v1462, %v1463
  %v1547 = vadd.f32 %v1546, %v1464
  %v1548 = vadd.f32 %v1547, %v1465
  %v1549 = vadd.f32 %v1548, %v1466
  %v1550 = vadd.f32 %v1549, %v1467
  %v1551 = vadd.f32 %v1550, %v1468
  %v1552 = vadd.f32 %v1551, %v1469
  %v1553 = vrot.slane %v1552, 4
  %v1554 = vadd.f32 %v1552, %v1553
  %v1555 = vrot.slane %v1554, 2
  %v1556 = vadd.f32 %v1554, %v1555
  %v1557 = vrot.slane %v1556, 1
  %v1558 = vadd.f32 %v1556, %v1557
  %v1559 = vadd.f32 %v1470, %v1471
  %v1560 = vadd.f32 %v1559, %v1472
  %v1561 = vadd.f32 %v1560, %v1473
  %v1562 = vadd.f32 %v1561, %v1474
  %v1563 = vadd.f32 %v1562, %v1475
  %v1564 = vadd.f32 %v1563, %v1476
  %v1565 = vadd.f32 %v1564, %v1477
  %v1566 = vrot.slane %v1565, 4
  %v1567 = vadd.f32 %v1565, %v1566
  %v1568 = vrot.slane %v1567, 2
  %v1569 = vadd.f32 %v1567, %v1568
  %v1570 = vrot.slane %v1569, 1
  %v1571 = vadd.f32 %v1569, %v1570
  %v1572 = vadd.f32 %v1478, %v1479
  %v1573 = vadd.f32 %v1572, %v1480
  %v1574 = vadd.f32 %v1573, %v1481
  %v1575 = vadd.f32 %v1574, %v1482
  %v1576 = vadd.f32 %v1575, %v1483
  %v1577 = vadd.f32 %v1576, %v1484
  %v1578 = vadd.f32 %v1577, %v1485
  %v1579 = vrot.slane %v1578, 4
  %v1580 = vadd.f32 %v1578, %v1579
  %v1581 = vrot.slane %v1580, 2
  %v1582 = vadd.f32 %v1580, %v1581
  %v1583 = vrot.slane %v1582, 1
  %v1584 = vadd.f32 %v1582, %v1583
  %v1585 = vadd.f32 %v1486, %v1487
  %v1586 = vadd.f32 %v1585, %v1488
  %v1587 = vadd.f32 %v1586, %v1489
  %v1588 = vadd.f32 %v1587, %v1490
  %v1589 = vadd.f32 %v1588, %v1491
  %v1590 = vadd.f32 %v1589, %v1492
  %v1591 = vadd.f32 %v1590, %v1493
  %v1592 = vrot.slane %v1591, 4
  %v1593 = vadd.f32 %v1591, %v1592
  %v1594 = vrot.slane %v1593, 2
  %v1595 = vadd.f32 %v1593, %v1594
  %v1596 = vrot.slane %v1595, 1
  %v1597 = vadd.f32 %v1595, %v1596
  %vm1606 = vcmask 1041409
  %v1607 = vsel %vm1606, %v1519, %v1506
  %vm1608 = vcmask 1042434
  %v1609 = vsel %vm1608, %v1532, %v1607
  %vm1610 = vcmask 1043459
  %v1611 = vsel %vm1610, %v1545, %v1609
  %vm1612 = vcmask 1044484
  %v1613 = vsel %vm1612, %v1558, %v1611
  %vm1614 = vcmask 1045509
  %v1615 = vsel %vm1614, %v1571, %v1613
  %vm1616 = vcmask 1046534
  %v1617 = vsel %vm1616, %v1584, %v1615
  %vm1618 = vcmask 1047559
  %v1619 = vsel %vm1618, %v1597, %v1617
  %1621 = vst [vmem:[%s5] sm:$0xff] %v1619
  // Predicated region
  $region22: #{cosrec_forward.1} parent=0 // pred_check
    _
  $region23: #{cosrec_forward.1} parent=0 // pred_check_branch
    %1623 = sbr.rel (0) target = $region25
  $region24: #{cosrec_forward.1} parent=0 // pred_region
    _
  $region25: #{cosrec_forward.1} parent=0 // pred_fallthru
    _
  // Predicated region
  $region26: #{cosrec_forward.1} parent=0 // pred_check
    _
  $region27: #{cosrec_forward.1} parent=0 // pred_check_branch
    %1625 = sbr.rel (0) target = $region29
  $region28: #{cosrec_forward.1} parent=0 // pred_region
    _
  $region29: #{cosrec_forward.1} parent=0 // pred_fallthru
    _

</llo_original>
